<compile_context>
chip_gen: v7x
topology: tpu7x:2x2x1
jax: 0.10.0
libtpu: 0.0.40
codegen_flags: <defaults>
</compile_context>

<pallas_src>
from functools import partial

import jax
import jax.numpy as jnp
from jax.experimental import pallas as pl
from jax.experimental.pallas import tpu as pltpu

BN_EPS = 1e-5
ACT = "relu"      # module is constructed with act='relu'
LANE = 128
SUBLANE = 8


def _round_up(x, m):
    return (x + m - 1) // m * m


# --------------------------------------------------------------------------
# Pallas kernel 1: fused matmul + bias + act, (M, N, K)-tiled with f32 acc.
#   y = act( cols @ W_folded + bias )        (BN scale already folded into W)
# --------------------------------------------------------------------------
def _matmul_bias_act_kernel(x_ref, w_ref, b_ref, o_ref, acc_ref, *, act):
    @pl.when(pl.program_id(2) == 0)
    def _():
        acc_ref[...] = jnp.zeros_like(acc_ref)

    acc_ref[...] += jnp.dot(x_ref[...], w_ref[...],
                            preferred_element_type=jnp.float32)

    @pl.when(pl.program_id(2) == pl.num_programs(2) - 1)
    def _():
        y = acc_ref[...] + b_ref[...]
        if act == "relu":
            y = jnp.maximum(y, 0.0)
        elif act == "silu":
            y = y * jax.nn.sigmoid(y)   # EUP path (module uses relu)
        o_ref[...] = y.astype(o_ref.dtype)


def _pick_n_tile(n_pad):
    for tn in (256, 128):
        if n_pad % tn == 0:
            return tn
    return LANE


def _pick_k_tile(k):
    # Tile K only when it is lane-aligned; otherwise a single full-K block
    # (legal: block dim == full array dim) avoids materializing padded cols.
    if k % LANE != 0:
        return k, 1
    for tk in (512, 384, 256, 128):
        if k % tk == 0:
            return tk, k // tk
    return LANE, k // LANE


def fused_matmul(cols, wmat, bias, act=ACT):
    """cols: (M, K) f32/bf16, wmat: (K, N_pad) bf16 (BN-folded), bias: (1, N_pad) f32.
    Returns (M, N_pad) f32."""
    M, K = cols.shape
    Kw, n_pad = wmat.shape
    assert Kw == K and n_pad % LANE == 0

    # M tiling: cap tm at 256 so large maps give >=2 parallel M steps
    # (megacore / pipeline), keep the sublane dim 8-aligned for small M.
    tm = 256 if M > 256 else _round_up(M, SUBLANE)
    m_pad = _round_up(M, tm)
    tn = _pick_n_tile(n_pad)
    tk, nk = _pick_k_tile(K)

    x = cols.astype(jnp.bfloat16)
    if m_pad != M:
        x = jnp.pad(x, ((0, m_pad - M), (0, 0)))

    # Per-step VMEM (bf16 ops, f32 acc) is a few MiB at most -> fits the 32 MiB
    # scoped default on v5e/v6e and v7x's 64 MiB physical VMEM.
    out = pl.pallas_call(
        partial(_matmul_bias_act_kernel, act=act),
        out_shape=jax.ShapeDtypeStruct((m_pad, n_pad), jnp.float32),
        grid=(m_pad // tm, n_pad // tn, nk),
        in_specs=[
            pl.BlockSpec((tm, tk), lambda i, j, k: (i, k)),
            pl.BlockSpec((tk, tn), lambda i, j, k: (k, j)),
            pl.BlockSpec((1, tn), lambda i, j, k: (0, j)),
        ],
        out_specs=pl.BlockSpec((tm, tn), lambda i, j, k: (i, j)),
        scratch_shapes=[pltpu.VMEM((tm, tn), jnp.float32)],
        compiler_params=pltpu.CompilerParams(
            dimension_semantics=("parallel", "parallel", "arbitrary")),
    )(x, wmat, bias)
    return out[:M] if m_pad != M else out


# --------------------------------------------------------------------------
# Pallas kernel 2: direct 3x3 stride-1 conv (NHWC).  The spatially padded tile
# is loaded once; the 9 taps are shifted in-VMEM slices -> no im2col in HBM.
# --------------------------------------------------------------------------
def _conv3x3_dir_kernel(x_ref, w_ref, b_ref, o_ref, *, act, Ho, Wo):
    tn = o_ref.shape[-1]
    acc = jnp.zeros((Ho * Wo, tn), jnp.float32)
    for di in range(3):
        for dj in range(3):
            tap = x_ref[0, pl.ds(di, Ho), pl.ds(dj, Wo), :]      # (Ho, Wo, Cin)
            tap = tap.reshape(Ho * Wo, tap.shape[-1])
            acc = acc + jnp.dot(tap, w_ref[di * 3 + dj],
                                preferred_element_type=jnp.float32)
    y = acc + b_ref[...]
    if act == "relu":
        y = jnp.maximum(y, 0.0)
    elif act == "silu":
        y = y * jax.nn.sigmoid(y)
    o_ref[...] = y.reshape(1, Ho, Wo, tn).astype(o_ref.dtype)


def _conv3x3_direct(prep, x):
    B, H, W, C = x.shape
    cinp = prep["cinp"]
    n_pad = prep["w9"].shape[-1]
    # TODO(synk): for very large feature maps, row-tile this block with a halo
    # instead of sending the full padded image per batch element.
    xp = jnp.pad(x, ((0, 0), (1, 1), (1, 1), (0, cinp - C))).astype(jnp.bfloat16)
    tn = _pick_n_tile(n_pad)
    out = pl.pallas_call(
        partial(_conv3x3_dir_kernel, act=ACT, Ho=H, Wo=W),
        out_shape=jax.ShapeDtypeStruct((B, H, W, n_pad), jnp.float32),
        grid=(B, n_pad // tn),
        in_specs=[
            pl.BlockSpec((1, H + 2, W + 2, cinp), lambda b, j: (b, 0, 0, 0)),
            pl.BlockSpec((9, cinp, tn), lambda b, j: (0, 0, j)),
            pl.BlockSpec((1, tn), lambda b, j: (0, j)),
        ],
        out_specs=pl.BlockSpec((1, H, W, tn), lambda b, j: (b, 0, 0, j)),
        compiler_params=pltpu.CompilerParams(
            dimension_semantics=("parallel", "parallel")),
    )(xp, prep["w9"], prep["bias"])
    return out[..., :prep["cout"]]


# --------------------------------------------------------------------------
# JAX glue: im2col fallback (NHWC), conv wrappers, parameter prep, wiring.
# --------------------------------------------------------------------------
def _conv3x3_im2col(prep, x, stride):
    """NHWC im2col -> fused matmul.  Used for stride-2 convs (and as fallback)."""
    B, H, W, C = x.shape
    xp = jnp.pad(x, ((0, 0), (1, 1), (1, 1), (0, 0)))
    Ho = (H + 2 - 3) // stride + 1
    Wo = (W + 2 - 3) // stride + 1
    taps = [xp[:, di:di + stride * Ho:stride, dj:dj + stride * Wo:stride, :]
            for di in range(3) for dj in range(3)]
    cols = jnp.concatenate(taps, axis=-1).reshape(B * Ho * Wo, 9 * C)
    y = fused_matmul(cols, prep["wmat"], prep["bias"])
    return y[:, :prep["cout"]].reshape(B, Ho, Wo, prep["cout"])


_DIRECT3X3_OK = None   # one-time probe result for the direct 3x3 kernel


def _conv3x3_s1(prep, x):
    global _DIRECT3X3_OK
    if _DIRECT3X3_OK is None:
        try:
            y = _conv3x3_direct(prep, x)
            jax.block_until_ready(y)
            _DIRECT3X3_OK = True
            return y
        except Exception:
            # Conservative guard: fall back to im2col if the direct kernel
            # cannot lower on this toolchain.
            _DIRECT3X3_OK = False
    if _DIRECT3X3_OK:
        return _conv3x3_direct(prep, x)
    return _conv3x3_im2col(prep, x, 1)


def conv1x1_apply(prep, x):
    B, H, W, C = x.shape
    y = fused_matmul(x.reshape(B * H * W, C), prep["wmat"], prep["bias"])
    return y[:, :prep["cout"]].reshape(B, H, W, prep["cout"])


def conv3x3_apply(prep, x, stride):
    if stride == 1:
        return _conv3x3_s1(prep, x)
    # TODO(synk): stride-2 taps could also be built in-kernel (halo tile +
    # phase decomposition); kept as NHWC im2col glue for now (only 2 such convs).
    return _conv3x3_im2col(prep, x, stride)


def base_conv_apply(prep, x, stride=1):
    if prep["k"] == 1:
        return conv1x1_apply(prep, x)
    return conv3x3_apply(prep, x, stride)


def upsample2_nearest_nhwc(x):
    # nn.Upsample(scale_factor=2, mode='nearest'), NHWC
    return jnp.repeat(jnp.repeat(x, 2, axis=1), 2, axis=2)


# ----------------------------- parameter init ------------------------------
def init_base_conv(key, c1, c2, k):
    kw, kg, kb, km, kv = jax.random.split(key, 5)
    return dict(
        w=0.05 * jax.random.normal(kw, (c2, c1, k, k), jnp.float32),
        gamma=1.0 + 0.1 * jax.random.normal(kg, (c2,), jnp.float32),
        beta=0.1 * jax.random.normal(kb, (c2,), jnp.float32),
        mean=0.1 * jax.random.normal(km, (c2,), jnp.float32),
        var=1.0 + jnp.abs(jax.random.normal(kv, (c2,), jnp.float32)),
    )


def init_csp(key, c_in, c_out, n):
    hidden = int(c_out * 0.5)
    keys = jax.random.split(key, 3 + 2 * n)
    params = dict(
        conv1=init_base_conv(keys[0], c_in, hidden, 1),
        conv2=init_base_conv(keys[1], c_in, hidden, 1),
        conv3=init_base_conv(keys[2], 2 * hidden, c_out, 1),
        m=[],
    )
    for i in range(n):
        params["m"].append(dict(
            conv1=init_base_conv(keys[3 + 2 * i], hidden, hidden, 1),
            conv2=init_base_conv(keys[4 + 2 * i], hidden, hidden, 3),
        ))
    return params


def init_pafpn(key, in_channels, out_channels, width=1.0, n_bottle=1):
    ks = jax.random.split(key, 8)
    oc0 = int(out_channels[0] * width)
    oc1 = int(out_channels[1] * width)
    oc2 = int(out_channels[2] * width)
    return dict(
        lateral_conv0=init_base_conv(ks[0], int(in_channels[2]), oc1, 1),
        C3_p4=init_csp(ks[1], int(in_channels[1] + oc1), oc1, n_bottle),
        reduce_conv1=init_base_conv(ks[2], oc1, oc0, 1),
        C3_p3=init_csp(ks[3], int(in_channels[0] + oc0), oc0, n_bottle),
        bu_conv2=init_base_conv(ks[4], oc0, oc0, 3),
        C3_n3=init_csp(ks[5], 2 * oc0, oc1, n_bottle),
        bu_conv1=init_base_conv(ks[6], oc1, oc1, 3),
        C3_n4=init_csp(ks[7], 2 * oc1, oc2, n_bottle),
    )


# -------------------------- parameter preparation ---------------------------
def _prep_conv(p):
    """One-time constant folding: BN scale into weights, pad Cout to 128 lanes,
    cast to bf16, build both matmul and direct-3x3 weight layouts."""
    w = p["w"]                                   # (c2, c1, k, k)
    c2, c1, k, _ = w.shape
    scale = p["gamma"] / jnp.sqrt(p["var"] + BN_EPS)
    bias = p["beta"] - p["mean"] * scale
    n_pad = _round_up(c2, LANE)

    w_khwc = jnp.transpose(w, (2, 3, 1, 0)) * scale          # (k, k, c1, c2)
    wmat = w_khwc.reshape(k * k * c1, c2)                    # rows: (kh, kw, cin)
    wmat = jnp.pad(wmat, ((0, 0), (0, n_pad - c2))).astype(jnp.bfloat16)
    bias_p = jnp.pad(bias, (0, n_pad - c2)).astype(jnp.float32)[None, :]

    prep = dict(wmat=wmat, bias=bias_p, cout=c2, k=k)
    if k == 3:
        cinp = _round_up(c1, LANE)
        w9 = jnp.pad(w_khwc, ((0, 0), (0, 0), (0, cinp - c1), (0, n_pad - c2)))
        prep["w9"] = w9.reshape(9, cinp, n_pad).astype(jnp.bfloat16)
        prep["cinp"] = cinp
    return prep


def prepare_csp(raw):
    p1 = _prep_conv(raw["conv1"])
    p2 = _prep_conv(raw["conv2"])
    # conv1 and conv2 consume the same input -> fuse into one matmul by
    # concatenating their (already lane-padded) weight columns.
    return dict(
        w12=jnp.concatenate([p1["wmat"], p2["wmat"]], axis=1),
        b12=jnp.concatenate([p1["bias"], p2["bias"]], axis=1),
        np1=p1["wmat"].shape[1], c1=p1["cout"], c2=p2["cout"],
        m=[dict(conv1=_prep_conv(bp["conv1"]), conv2=_prep_conv(bp["conv2"]))
           for bp in raw["m"]],
        conv3=_prep_conv(raw["conv3"]),
    )


def prepare_pafpn(raw):
    return dict(
        lateral_conv0=_prep_conv(raw["lateral_conv0"]),
        C3_p4=prepare_csp(raw["C3_p4"]),
        reduce_conv1=_prep_conv(raw["reduce_conv1"]),
        C3_p3=prepare_csp(raw["C3_p3"]),
        bu_conv2=_prep_conv(raw["bu_conv2"]),
        C3_n3=prepare_csp(raw["C3_n3"]),
        bu_conv1=_prep_conv(raw["bu_conv1"]),
        C3_n4=prepare_csp(raw["C3_n4"]),
    )


# --------------------------------- forward ----------------------------------
def csp_apply(p, x):
    B, H, W, C = x.shape
    y = fused_matmul(x.reshape(B * H * W, C), p["w12"], p["b12"])   # conv1+conv2
    x1 = y[:, :p["c1"]].reshape(B, H, W, p["c1"])
    x2 = y[:, p["np1"]:p["np1"] + p["c2"]].reshape(B, H, W, p["c2"])
    for bp in p["m"]:
        # Bottleneck (shortcut=False in the PAFPN CSP layers)
        x1 = conv1x1_apply(bp["conv1"], x1)
        x1 = conv3x3_apply(bp["conv2"], x1, 1)
    xc = jnp.concatenate([x1, x2], axis=-1)
    return conv1x1_apply(p["conv3"], xc)


def pafpn_forward(params, x2, x1, x0):
    """x2, x1, x0: backbone feature maps in NCHW (PyTorch layout)."""
    # Single layout conversion at the boundary; NHWC everywhere inside.
    x2 = jnp.transpose(x2, (0, 2, 3, 1))
    x1 = jnp.transpose(x1, (0, 2, 3, 1))
    x0 = jnp.transpose(x0, (0, 2, 3, 1))

    fpn_out0 = conv1x1_apply(params["lateral_conv0"], x0)
    f_out0 = upsample2_nearest_nhwc(fpn_out0)
    f_out0 = jnp.concatenate([f_out0, x1], axis=-1)
    f_out0 = csp_apply(params["C3_p4"], f_out0)

    fpn_out1 = conv1x1_apply(params["reduce_conv1"], f_out0)
    f_out1 = upsample2_nearest_nhwc(fpn_out1)
    f_out1 = jnp.concatenate([f_out1, x2], axis=-1)
    pan_out2 = csp_apply(params["C3_p3"], f_out1)

    p_out1 = conv3x3_apply(params["bu_conv2"], pan_out2, 2)
    p_out1 = jnp.concatenate([p_out1, fpn_out1], axis=-1)
    pan_out1 = csp_apply(params["C3_n3"], p_out1)

    p_out0 = conv3x3_apply(params["bu_conv1"], pan_out1, 2)
    p_out0 = jnp.concatenate([p_out0, fpn_out0], axis=-1)
    pan_out0 = csp_apply(params["C3_n4"], p_out0)

    to_nchw = lambda t: jnp.transpose(t, (0, 3, 1, 2))
    return to_nchw(pan_out2), to_nchw(pan_out1), to_nchw(pan_out0)


if __name__ == "__main__":
    # Small config consistent with the module structure (width=1, n=1).
    B = 2
    in_channels = [16, 32, 64]     # channels of x2, x1, x0
    out_channels = [8, 16, 32]

    key = jax.random.PRNGKey(0)
    kp, k2, k1, k0 = jax.random.split(key, 4)

    raw_params = init_pafpn(kp, in_channels, out_channels, width=1.0, n_bottle=1)
    params = prepare_pafpn(raw_params)   # BN fold, lane padding, bf16 cast

    # Backbone feature maps (NCHW) at strides 1x, 2x, 4x of the finest level.
    x2 = jax.random.normal(k2, (B, in_channels[0], 16, 16), jnp.float32)
    x1 = jax.random.normal(k1, (B, in_channels[1], 8, 8), jnp.float32)
    x0 = jax.random.normal(k0, (B, in_channels[2], 4, 4), jnp.float32)

    pan_out2, pan_out1, pan_out0 = pafpn_forward(params, x2, x1, x0)
    jax.block_until_ready((pan_out2, pan_out1, pan_out0))

    assert pan_out2.shape == (B, out_channels[0], 16, 16)
    assert pan_out1.shape == (B, out_channels[1], 8, 8)
    assert pan_out0.shape == (B, out_channels[2], 4, 4)
    assert bool(jnp.all(jnp.isfinite(pan_out2)))
    assert bool(jnp.all(jnp.isfinite(pan_out1)))
    assert bool(jnp.all(jnp.isfinite(pan_out0)))
    print("KERNEL_OK")
</pallas_src>

<mosaic_0001>
module attributes {stable_mosaic.version = 11 : i64} {
  func.func @_matmul_bias_act_kernel(%arg0: i32, %arg1: i32, %arg2: i32, %arg3: memref<32x64xbf16, #tpu.memory_space<vmem>>, %arg4: memref<64x128xbf16, #tpu.memory_space<vmem>>, %arg5: memref<1x128xf32, #tpu.memory_space<vmem>>, %arg6: memref<32x128xf32, #tpu.memory_space<vmem>>, %arg7: memref<32x128xf32, #tpu.memory_space<vmem>>) attributes {dimension_semantics = [#tpu.dimension_semantics<parallel>, #tpu.dimension_semantics<parallel>, #tpu.dimension_semantics<arbitrary>], iteration_bounds = array<i64: 1, 1, 1>, scalar_prefetch = 0 : i64, scratch_operands = 1 : i64, tpu.core_type = #tpu.core_type<tc>, window_params = [{transform_indices = @transform_0, window_bounds = array<i64: 32, 64>}, {transform_indices = @transform_1, window_bounds = array<i64: 64, 128>}, {transform_indices = @transform_2, window_bounds = array<i64: 1, 128>}, {transform_indices = @transform_3, window_bounds = array<i64: 32, 128>}]} {
    %c0_i32 = arith.constant 0 : i32
    %0 = arith.cmpi eq, %arg2, %c0_i32 : i32
    %1 = arith.extui %0 : i1 to i32
    %c0_i32_0 = arith.constant 0 : i32
    %2 = arith.cmpi ne, %1, %c0_i32_0 : i32
    scf.if %2 {
      %cst_10 = arith.constant 0.000000e+00 : f32
      %12 = vector.broadcast %cst_10 : f32 to vector<32x128xf32>
      %c0_11 = arith.constant 0 : index
      %c0_12 = arith.constant 0 : index
      %13 = vector.load %arg7[%c0_11, %c0_12] : memref<32x128xf32, #tpu.memory_space<vmem>>, vector<32x128xf32>
      tpu.vector_store %arg7[%c0_11, %c0_12], %12 {strides = array<i32>} : memref<32x128xf32, #tpu.memory_space<vmem>>, vector<32x128xf32>,
    } else {
    }
    %c0 = arith.constant 0 : index
    %c0_1 = arith.constant 0 : index
    %3 = vector.load %arg7[%c0, %c0_1] : memref<32x128xf32, #tpu.memory_space<vmem>>, vector<32x128xf32>
    %c0_2 = arith.constant 0 : index
    %c0_3 = arith.constant 0 : index
    %4 = vector.load %arg3[%c0_2, %c0_3] : memref<32x64xbf16, #tpu.memory_space<vmem>>, vector<32x64xbf16>
    %c0_4 = arith.constant 0 : index
    %c0_5 = arith.constant 0 : index
    %5 = vector.load %arg4[%c0_4, %c0_5] : memref<64x128xbf16, #tpu.memory_space<vmem>>, vector<64x128xbf16>
    %cst = arith.constant dense<0.000000e+00> : vector<32x128xf32>
    %6 = tpu.matmul %4, %5, %cst {dimension_numbers = #tpu.dot_dimension_numbers<[1], [0], [0], [1], [0, 0, 1, 1], [], []>} : vector<32x64xbf16>, vector<64x128xbf16>, vector<32x128xf32> -> vector<32x128xf32>
    %7 = arith.addf %3, %6 : vector<32x128xf32>
    %c0_6 = arith.constant 0 : index
    %c0_7 = arith.constant 0 : index
    %8 = vector.load %arg7[%c0_6, %c0_7] : memref<32x128xf32, #tpu.memory_space<vmem>>, vector<32x128xf32>
    tpu.vector_store %arg7[%c0_6, %c0_7], %7 {strides = array<i32>} : memref<32x128xf32, #tpu.memory_space<vmem>>, vector<32x128xf32>,
    %c0_i32_8 = arith.constant 0 : i32
    %9 = arith.cmpi eq, %arg2, %c0_i32_8 : i32
    %10 = arith.extui %9 : i1 to i32
    %c0_i32_9 = arith.constant 0 : i32
    %11 = arith.cmpi ne, %10, %c0_i32_9 : i32
    scf.if %11 {
      %c0_10 = arith.constant 0 : index
      %c0_11 = arith.constant 0 : index
      %12 = vector.load %arg7[%c0_10, %c0_11] : memref<32x128xf32, #tpu.memory_space<vmem>>, vector<32x128xf32>
      %c0_12 = arith.constant 0 : index
      %c0_13 = arith.constant 0 : index
      %13 = vector.load %arg5[%c0_12, %c0_13] : memref<1x128xf32, #tpu.memory_space<vmem>>, vector<1x128xf32>
      %14 = vector.broadcast %13 : vector<1x128xf32> to vector<32x128xf32>
      %15 = arith.addf %12, %14 : vector<32x128xf32>
      %cst_14 = arith.constant 0.000000e+00 : f32
      %16 = vector.broadcast %cst_14 : f32 to vector<32x128xf32>
      %17 = arith.maximumf %15, %16 : vector<32x128xf32>
      %c0_15 = arith.constant 0 : index
      %c0_16 = arith.constant 0 : index
      %18 = vector.load %arg6[%c0_15, %c0_16] : memref<32x128xf32, #tpu.memory_space<vmem>>, vector<32x128xf32>
      tpu.vector_store %arg6[%c0_15, %c0_16], %17 {strides = array<i32>} : memref<32x128xf32, #tpu.memory_space<vmem>>, vector<32x128xf32>,
    } else {
    }
    return
  }
  func.func @transform_0(%arg0: i32, %arg1: i32, %arg2: i32) -> (i32, i32) {
    %c0_i32 = arith.constant 0 : i32
    return %arg0, %arg2 : i32, i32
  }
  func.func @transform_1(%arg0: i32, %arg1: i32, %arg2: i32) -> (i32, i32) {
    %c0_i32 = arith.constant 0 : i32
    return %arg2, %arg1 : i32, i32
  }
  func.func @transform_2(%arg0: i32, %arg1: i32, %arg2: i32) -> (i32, i32) {
    %c0_i32 = arith.constant 0 : i32
    %c0_i32_0 = arith.constant 0 : i32
    return %c0_i32, %arg1 : i32, i32
  }
  func.func @transform_3(%arg0: i32, %arg1: i32, %arg2: i32) -> (i32, i32) {
    %c0_i32 = arith.constant 0 : i32
    return %arg0, %arg1 : i32, i32
  }
}

</mosaic_0001>

<llo_original>
// kernel: tpu_custom_call.1
$region0: #{tpu_custom_call.1}
  #allocation0 [shape = 'u32[]', space=smem, size = 0x4, offset = 0x4, fixed_abs, tag = 'smem constant byte address 0x4 - core index']
  #allocation1 [shape = 'u32[144,128]{1,0:T(1,128)}', space=vmem, size = 0x12000, scoped, tag = 'internal scratch']
  #allocation2 [shape = 'f32[32,128]{1,0:T(8,128)}', space=vmem, size = 0x4000, scoped, tag = 'scratch operand']
  %s0 = inlined_call_operand.hbm [shape: bf16[32,64], index: 0, kind: input, shape index: {}]
  %s1 = inlined_call_operand.hbm [shape: bf16[64,128], index: 1, kind: input, shape index: {}]
  %s2 = inlined_call_operand.vmem [shape: f32[1,128], index: 2, kind: input, shape index: {}]
  %s3 = inlined_call_operand.hbm [shape: f32[32,128], index: 3, kind: output, shape index: {}]
  %s4 = sld [smem:[#allocation0]]
  $region38: #{tpu_custom_call.1} parent=0
    _
  %s6 = ssub.s32 1, %s4
  %s7 = scalar_select 0, %s6, %s4
  $region1: #{tpu_custom_call.1} parent=0
    #allocation3 [shape = 'u8[8192]{0}', space=vmem, size = 0x2000, scoped, tag = 'input window, operand 0, single buffered']
    #allocation4 [shape = 's32[1]{0}', space=sflag, size = 0x4, scoped, tag = 'scoped memory for tpu_custom_call.1']
    #allocation5 [shape = 's32[1]{0}', space=sflag, size = 0x4, scoped, tag = 'scoped memory for tpu_custom_call.1']
    #allocation6 [shape = 'u8[16384]{0}', space=vmem, size = 0x4000, scoped, tag = 'input window, operand 1, single buffered']
    #allocation7 [shape = 's32[1]{0}', space=sflag, size = 0x4, scoped, tag = 'scoped memory for tpu_custom_call.1']
    #allocation8 [shape = 'u8[16384]{0}', space=vmem, size = 0x4000, scoped, tag = 'output window, operand 0, single buffered']
    %8 = vsyncpa [#allocation4], 0
    %9 = vsyncpa [#allocation7], 0
    %10 = vsyncpa [#allocation5], 0
    // Predicated region
    $region2: #{tpu_custom_call.1} parent=1 // pred_check
      _
    $region3: #{tpu_custom_call.1} parent=1 // pred_check_branch
      %12 = sbr.rel (0) target = $region5
    $region4: #{tpu_custom_call.1} parent=1 // pred_region
      %s14 = ssub.s32 256, 256
      %15 = vsyncadd [#allocation4], %s14
      %s16 = sshll.u32 [#allocation3], 4
      %s17 = int_to_ptr.vmem [resolvable:$true] %s16
      %22 = dma.hbm_to_vmem [thread:$0]  %s0, 256, %s17, [#allocation4], 64, 64, 4
    $region5: #{tpu_custom_call.1} parent=1 // pred_fallthru
      _
    // Predicated region
    $region6: #{tpu_custom_call.1} parent=1 // pred_check
      _
    $region7: #{tpu_custom_call.1} parent=1 // pred_check_branch
      %24 = sbr.rel (0) target = $region9
    $region8: #{tpu_custom_call.1} parent=1 // pred_region
      %s26 = ssub.s32 512, 512
      %27 = vsyncadd [#allocation7], %s26
      %s28 = sshll.u32 [#allocation6], 4
      %s29 = int_to_ptr.vmem [resolvable:$true] %s28
      %34 = dma.hbm_to_vmem [thread:$0]  %s1, 512, %s29, [#allocation7], 64, 64, 4
    $region9: #{tpu_custom_call.1} parent=1 // pred_fallthru
      _
    // Predicated region
    $region10: #{tpu_custom_call.1} parent=1 // pred_check
      _
    $region11: #{tpu_custom_call.1} parent=1 // pred_check_branch
      %36 = sbr.rel (0) target = $region13
    $region12: #{tpu_custom_call.1} parent=1 // pred_region
      _
    $region13: #{tpu_custom_call.1} parent=1 // pred_fallthru
      _
    // Predicated region
    $region14: #{tpu_custom_call.1} parent=1 // pred_check
      _
    $region15: #{tpu_custom_call.1} parent=1 // pred_check_branch
      %38 = sbr.rel (0) target = $region17
    $region16: #{tpu_custom_call.1} parent=1 // pred_region
      %39 = dma.done [#allocation4], 256
    $region17: #{tpu_custom_call.1} parent=1 // pred_fallthru
      _
    // Predicated region
    $region18: #{tpu_custom_call.1} parent=1 // pred_check
      _
    $region19: #{tpu_custom_call.1} parent=1 // pred_check_branch
      %41 = sbr.rel (0) target = $region21
    $region20: #{tpu_custom_call.1} parent=1 // pred_region
      %42 = dma.done [#allocation7], 512
    $region21: #{tpu_custom_call.1} parent=1 // pred_fallthru
      _
    %p44 = scmp.eq.s32.totalorder 0, 0
    // Predicated region
    $region22: #{tpu_custom_call.1} parent=1 // pred_check
      %p45 = pneg %p44
    $region23: #{tpu_custom_call.1} parent=1 // pred_check_branch
      %47 = sbr.rel (%p45) target = $region25
    $region24: #{tpu_custom_call.1} parent=1 // pred_region
      %48 = vst [vmem:[#allocation2] sm:$0xff] 0.0
      %49 = vst [vmem:[#allocation2 + $0x8] sm:$0xff] 0.0
      %50 = vst [vmem:[#allocation2 + $0x10] sm:$0xff] 0.0
      %51 = vst [vmem:[#allocation2 + $0x18] sm:$0xff] 0.0
    $region25: #{tpu_custom_call.1} parent=1 // pred_fallthru
      _
    %v52 = vld [vmem:[#allocation2] sm:$0xff]
    %v53 = vld [vmem:[#allocation2 + $0x8] sm:$0xff]
    %v54 = vld [vmem:[#allocation2 + $0x10] sm:$0xff]
    %v55 = vld [vmem:[#allocation2 + $0x18] sm:$0xff]
    %v56 = vld [vmem:[#allocation3] sm:$0xf]
    %v57 = vld [vmem:[#allocation3 + $0x4] sm:$0xf]
    %v58 = vld [vmem:[#allocation3 + $0x8] sm:$0xf]
    %v59 = vld [vmem:[#allocation3 + $0xc] sm:$0xf]
    %v60 = vld [vmem:[#allocation6] sm:$0xf]
    %v61 = vld [vmem:[#allocation6 + $0x4] sm:$0xf]
    %v62 = vld [vmem:[#allocation6 + $0x8] sm:$0xf]
    %v63 = vld [vmem:[#allocation6 + $0xc] sm:$0xf]
    %v64 = vld [vmem:[#allocation6 + $0x10] sm:$0xf]
    %v65 = vld [vmem:[#allocation6 + $0x14] sm:$0xf]
    %v66 = vld [vmem:[#allocation6 + $0x18] sm:$0xf]
    %v67 = vld [vmem:[#allocation6 + $0x1c] sm:$0xf]
    %v72 = vunpack.c.l.b16 %v56
    %v73 = vunpack.c.l.b16 %v57
    %v74 = vunpack.c.l.b16 %v58
    %v75 = vunpack.c.l.b16 %v59
    %v76 = vpack.c.b16 %v73, %v72
    %v77 = vpack.c.b16 %v75, %v74
    %v86 = vunpack.c.l.b16 %v60
    %v87 = vunpack.c.l.b16 %v61
    %v88 = vunpack.c.l.b16 %v62
    %v89 = vunpack.c.l.b16 %v63
    %v90 = vunpack.c.l.b16 %v64
    %v91 = vunpack.c.l.b16 %v65
    %v92 = vunpack.c.l.b16 %v66
    %v93 = vunpack.c.l.b16 %v67
    %v94 = vpack.c.b16 %v87, %v86
    %v95 = vpack.c.b16 %v89, %v88
    %v96 = vpack.c.b16 %v91, %v90
    %v97 = vpack.c.b16 %v93, %v92
    %vm102 = vcmask 523264
    %v104 = vsel %vm102, %v76, 0
    %v107 = vsel %vm102, %v77, 0
    %109 = vmatprep.subr.bf16.mxu0 0
    %110 = vmatpush1.bf16.msra.mxu0 %v94
    %111 = vmatprep.subr.bf16.mxu0 0
    %112 = vmatpush1.bf16.msra.mxu0 %v95
    %113 = vmatprep.subr.bf16.mxu0 0
    %114 = vmatpush1.bf16.msra.mxu0 %v96
    %115 = vmatprep.subr.bf16.mxu0 0
    %116 = vmatpush1.bf16.msra.mxu0 %v97
    %117 = vmatprep.subr.bf16.mxu0 0
    %118 = vmatpush1.bf16.msra.mxu0 0
    %119 = vmatprep.subr.bf16.mxu0 0
    %120 = vmatpush1.bf16.msra.mxu0 0
    %121 = vmatprep.subr.bf16.mxu0 0
    %122 = vmatpush1.bf16.msra.mxu0 0
    %123 = vmatprep.subr.bf16.mxu0 0
    %124 = vmatpush1.bf16.msra.mxu0 0
    %125 = vmatprep.subr.bf16.mxu0 0
    %126 = vmatpush1.bf16.msra.mxu0 0
    %127 = vmatprep.subr.bf16.mxu0 0
    %128 = vmatpush1.bf16.msra.mxu0 0
    %129 = vmatprep.subr.bf16.mxu0 0
    %130 = vmatpush1.bf16.msra.mxu0 0
    %131 = vmatprep.subr.bf16.mxu0 0
    %132 = vmatpush1.bf16.msra.mxu0 0
    %133 = vmatprep.subr.bf16.mxu0 0
    %134 = vmatpush1.bf16.msra.mxu0 0
    %135 = vmatprep.subr.bf16.mxu0 0
    %136 = vmatpush1.bf16.msra.mxu0 0
    %137 = vmatprep.subr.bf16.mxu0 0
    %138 = vmatpush1.bf16.msra.mxu0 0
    %139 = vmatprep.subr.bf16.mxu0 0
    %140 = vmatpush1.bf16.msra.mxu0 0
    %141 = vmatprep.mubr.bf16.mxu0 0
    %142 = vmatmul.mubr.bf16.gmra.mrb[0].mxu0 %v104
    %v143 = vpop.f32.mrb[0].mxu0
    %v144 = vadd.f32 0.0, %v143
    %v145 = vpop.f32.mrb[0].mxu0
    %v146 = vpop.f32.mrb[0].mxu0
    %v147 = vadd.f32 0.0, %v146
    %v148 = vpop.f32.mrb[0].mxu0
    %149 = vmatprep.mubr.bf16.mxu0 0
    %150 = vmatmul.mubr.bf16.gmra.mrb[0].mxu0 %v107
    %v151 = vpop.f32.mrb[0].mxu0
    %v152 = vadd.f32 0.0, %v151
    %v153 = vpop.f32.mrb[0].mxu0
    %v154 = vpop.f32.mrb[0].mxu0
    %v155 = vadd.f32 0.0, %v154
    %v156 = vpop.f32.mrb[0].mxu0
    %157 = vdwg.mxu0
    %v158 = vadd.f32 %v52, %v144
    %v159 = vadd.f32 %v53, %v147
    %v160 = vadd.f32 %v54, %v152
    %v161 = vadd.f32 %v55, %v155
    %162 = vst [vmem:[#allocation2] sm:$0xff] %v158
    %163 = vst [vmem:[#allocation2 + $0x8] sm:$0xff] %v159
    %164 = vst [vmem:[#allocation2 + $0x10] sm:$0xff] %v160
    %165 = vst [vmem:[#allocation2 + $0x18] sm:$0xff] %v161
    // Predicated region
    $region26: #{tpu_custom_call.1} parent=1 // pred_check
      %p166 = pneg %p44
    $region27: #{tpu_custom_call.1} parent=1 // pred_check_branch
      %168 = sbr.rel (%p166) target = $region29
    $region28: #{tpu_custom_call.1} parent=1 // pred_region
      %v169 = vld [vmem:[#allocation2] sm:$0xff]
      %v170 = vld [vmem:[#allocation2 + $0x8] sm:$0xff]
      %v171 = vld [vmem:[#allocation2 + $0x10] sm:$0xff]
      %v172 = vld [vmem:[#allocation2 + $0x18] sm:$0xff]
      %v173 = vld [vmem:[%s2] sm:$0x1]
      %v175 = vlaneseq
      %v176 = vshrl.u32 %v175, 7
      %v177 = vsub.s32 0, %v176
      %v178 = vrot.slane %v173, %v177
      %v180 = vadd.f32 %v169, %v178
      %v181 = vadd.f32 %v170, %v178
      %v182 = vadd.f32 %v171, %v178
      %v183 = vadd.f32 %v172, %v178
      %v184 = vmax.f32 %v180, 0.0
      %v185 = vmax.f32 %v181, 0.0
      %v186 = vmax.f32 %v182, 0.0
      %v187 = vmax.f32 %v183, 0.0
      %188 = vst [vmem:[#allocation8] sm:$0xff] %v184
      %189 = vst [vmem:[#allocation8 + $0x8] sm:$0xff] %v185
      %190 = vst [vmem:[#allocation8 + $0x10] sm:$0xff] %v186
      %191 = vst [vmem:[#allocation8 + $0x18] sm:$0xff] %v187
    $region29: #{tpu_custom_call.1} parent=1 // pred_fallthru
      _
    // Predicated region
    $region30: #{tpu_custom_call.1} parent=1 // pred_check
      _
    $region31: #{tpu_custom_call.1} parent=1 // pred_check_branch
      %193 = sbr.rel (0) target = $region33
    $region32: #{tpu_custom_call.1} parent=1 // pred_region
      %s195 = ssub.s32 512, 512
      %196 = vsyncadd [#allocation5], %s195
      %s197 = sshll.u32 [#allocation8], 4
      %s198 = int_to_ptr.vmem [resolvable:$true] %s197
      %203 = dma.vmem_to_hbm [thread:$0]  %s198, 512, %s3, [#allocation5], 128, 128, 8
    $region33: #{tpu_custom_call.1} parent=1 // pred_fallthru
      _
    // Predicated region
    $region34: #{tpu_custom_call.1} parent=1 // pred_check
      _
    $region35: #{tpu_custom_call.1} parent=1 // pred_check_branch
      %205 = sbr.rel (0) target = $region37
    $region36: #{tpu_custom_call.1} parent=1 // pred_region
      %206 = dma.done [#allocation5], 512
    $region37: #{tpu_custom_call.1} parent=1 // pred_fallthru
      _
    %207 = vsyncpa [#allocation4], 1
    %208 = vsyncpa [#allocation7], 1
    %209 = vsyncpa [#allocation5], 1

</llo_original>
